<compile_context>
chip_gen: v7x
topology: tpu7x:2x2x1
jax: 0.10.0
libtpu: 0.0.40
codegen_flags: <defaults>
</compile_context>

<pallas_src>
import functools
import math

import jax
import jax.numpy as jnp
from jax.experimental import pallas as pl
from jax.experimental.pallas import tpu as pltpu


def _round_up(x, m):
    return ((x + m - 1) // m) * m


def _cdiv(a, b):
    return (a + b - 1) // b


def _baseline_loss_kernel(x_ref, w1_ref, b1_ref, w2_ref, b2_ref, y_ref, nll_ref,
                          acc_ref, *, num_classes, tile_k, w1_resident):
    # x_ref: (TM, TK) f32/bf16            w1_ref: (K_pad|TK, F_pad) bf16
    # b1_ref: (1, F_pad) f32              w2_ref: (F_pad, C_pad) bf16
    # b2_ref: (1, C_pad) f32              y_ref: (TM, 1) int32
    # nll_ref: (TM, 128) f32 out          acc_ref: (TM, F_pad) f32 scratch
    k = pl.program_id(1)
    nk = pl.num_programs(1)

    @pl.when(k == 0)
    def _init():
        acc_ref[...] = jnp.zeros_like(acc_ref)

    # Dominant matmul: cast the streamed x tile to bf16 in VMEM (MXU-native operand,
    # no extra HBM pass); accumulate in f32.
    x_blk = x_ref[...].astype(jnp.bfloat16)
    if w1_resident:
        start = pl.multiple_of(k * tile_k, 128)
        w1_blk = w1_ref[pl.ds(start, tile_k), :]
    else:
        w1_blk = w1_ref[...]
    acc_ref[...] += jnp.dot(x_blk, w1_blk, preferred_element_type=jnp.float32)

    @pl.when(k == nk - 1)
    def _epilogue():
        # Featurizer epilogue: bias + ReLU in f32.
        h = jnp.maximum(acc_ref[...] + b1_ref[...], 0.0)

        # Classifier: bf16 MXU operands, f32 accumulation/result.
        logits = jnp.dot(h.astype(jnp.bfloat16), w2_ref[...],
                         preferred_element_type=jnp.float32)
        logits = logits + b2_ref[...]

        # Mask padded class columns before the softmax (f32 path -> -1e30 is safe).
        class_ids = jax.lax.broadcasted_iota(jnp.int32, logits.shape, 1)
        logits = jnp.where(class_ids < num_classes, logits, -1e30)

        # Numerically stable log-softmax in f32.
        m = jnp.max(logits, axis=-1, keepdims=True)
        z = logits - m
        lse = jnp.log(jnp.sum(jnp.exp(z), axis=-1, keepdims=True))
        logp = z - lse

        # Per-row NLL (padded batch rows are discarded in the wrapper).
        # NOTE: labels outside [0, num_classes) silently yield nll=0 (no ignore_index here).
        picked = jnp.where(class_ids == y_ref[...], logp, 0.0)
        nll = -jnp.sum(picked, axis=-1, keepdims=True)           # (TM, 1)
        nll_ref[...] = jnp.broadcast_to(nll, nll_ref.shape)       # lane-dense store


def prepare_baseline_params(w1, b1, w2, b2, *, max_tk=2048):
    """Pad / cast the parameters ONCE (hoisted out of the per-step loss call)."""
    d_in, feat = w1.shape
    num_classes = w2.shape[1]

    # K tiling: TK up to max_tk, chosen so padding waste stays < 128 per K tile.
    k128 = _round_up(d_in, 128)
    n_k = _cdiv(k128, max_tk)
    tk = _round_up(_cdiv(k128, n_k), 128)
    k_pad = tk * n_k

    f_pad = _round_up(feat, 128)
    c_pad = _round_up(num_classes, 128)

    # w1 stays VMEM-resident across the whole K loop (constant index_map -> loaded once)
    # when its double-buffered footprint is small; otherwise it streams per K step.
    # Threshold is conservative so it also fits v7x's smaller VMEM without raising limits.
    w1_resident = 2 * (k_pad * f_pad * 2) <= 16 * 1024 * 1024

    w1_p = jnp.zeros((k_pad, f_pad), jnp.bfloat16).at[:d_in, :feat].set(
        w1.astype(jnp.bfloat16))
    b1_p = jnp.zeros((1, f_pad), jnp.float32).at[:, :feat].set(
        b1.astype(jnp.float32).reshape(1, feat))
    w2_p = jnp.zeros((f_pad, c_pad), jnp.bfloat16).at[:feat, :num_classes].set(
        w2.astype(jnp.bfloat16))
    b2_p = jnp.zeros((1, c_pad), jnp.float32).at[:, :num_classes].set(
        b2.astype(jnp.float32).reshape(1, num_classes))

    return dict(w1=w1_p, b1=b1_p, w2=w2_p, b2=b2_p,
                d_in=d_in, num_classes=num_classes,
                tk=tk, k_pad=k_pad, n_k=n_k, f_pad=f_pad, c_pad=c_pad,
                w1_resident=w1_resident)


def baseline_loss(x_nchw, y, params, *, max_tm=512):
    """Forward pass of Baseline: returns scalar cross-entropy loss (mean over batch)."""
    B = x_nchw.shape[0]
    d_in = params["d_in"]
    assert math.prod(x_nchw.shape[1:]) == d_in, "featurizer input dim mismatch"

    tk, k_pad, n_k = params["tk"], params["k_pad"], params["n_k"]
    f_pad, c_pad = params["f_pad"], params["c_pad"]
    num_classes = params["num_classes"]
    w1_resident = params["w1_resident"]

    # Batch tiling: TM up to max_tm (multiple of 8), sized to keep padding waste small and
    # to expose >=2 tiles on the parallel axis for large batches (v7x megacore).
    b8 = _round_up(B, 8)
    n_b = _cdiv(b8, max_tm)
    tm = _round_up(_cdiv(b8, n_b), 8)
    b_pad = tm * n_b

    x_flat = x_nchw.reshape(B, d_in)
    if b_pad != B or k_pad != d_in:
        # Padding forces a copy anyway -> fold the bf16 cast into it.
        x_in = jnp.zeros((b_pad, k_pad), jnp.bfloat16).at[:B, :d_in].set(
            x_flat.astype(jnp.bfloat16))
    else:
        # No padding needed: stream x as-is (no extra HBM pass); cast in-kernel.
        x_in = x_flat

    y_p = y.astype(jnp.int32).reshape(B, 1)
    if b_pad != B:
        y_p = jnp.zeros((b_pad, 1), jnp.int32).at[:B, :].set(y_p)

    grid = (n_b, n_k)

    if w1_resident:
        w1_spec = pl.BlockSpec((k_pad, f_pad), lambda i, k: (0, 0))
        w1_blk_bytes = k_pad * f_pad * 2
    else:
        w1_spec = pl.BlockSpec((tk, f_pad), lambda i, k: (k, 0))
        w1_blk_bytes = tk * f_pad * 2

    # Double-buffered VMEM footprint estimate + headroom (v7x-safe caps).
    x_blk_bytes = tm * tk * jnp.dtype(x_in.dtype).itemsize
    vmem_est = (2 * (x_blk_bytes + w1_blk_bytes + f_pad * 4 + f_pad * c_pad * 2
                     + c_pad * 4 + tm * 4 + tm * 128 * 4)
                + tm * f_pad * 4)
    vmem_limit = int(min(max(vmem_est * 5 // 4, 4 * 1024 * 1024), 48 * 1024 * 1024))

    kernel = functools.partial(_baseline_loss_kernel,
                               num_classes=num_classes,
                               tile_k=tk,
                               w1_resident=w1_resident)

    nll = pl.pallas_call(
        kernel,
        out_shape=jax.ShapeDtypeStruct((b_pad, 128), jnp.float32),
        grid_spec=pltpu.PrefetchScalarGridSpec(
            num_scalar_prefetch=0,
            grid=grid,
            in_specs=[
                pl.BlockSpec((tm, tk), lambda i, k: (i, k)),        # x
                w1_spec,                                            # w1
                pl.BlockSpec((1, f_pad), lambda i, k: (0, 0)),      # b1
                pl.BlockSpec((f_pad, c_pad), lambda i, k: (0, 0)),  # w2
                pl.BlockSpec((1, c_pad), lambda i, k: (0, 0)),      # b2
                pl.BlockSpec((tm, 1), lambda i, k: (i, 0)),         # y
            ],
            out_specs=pl.BlockSpec((tm, 128), lambda i, k: (i, 0)),
            scratch_shapes=[pltpu.VMEM((tm, f_pad), jnp.float32)],
        ),
        compiler_params=pltpu.CompilerParams(
            dimension_semantics=("parallel", "arbitrary"),
            vmem_limit_bytes=vmem_limit,
        ),
    )(x_in, params["w1"], params["b1"], params["w2"], params["b2"], y_p)

    # Tiny final reduction outside the kernel; divide by the TRUE batch size.
    return jnp.sum(nll[:B, 0]) / jnp.float32(B)


def _reference_loss(x_nchw, y, w1, b1, w2, b2):
    # Pure-JAX reference using the same bf16-operand / f32-accumulate matmul contract.
    B = x_nchw.shape[0]
    x_flat = x_nchw.reshape(B, -1)
    h = jnp.maximum(
        jnp.dot(x_flat.astype(jnp.bfloat16), w1.astype(jnp.bfloat16),
                preferred_element_type=jnp.float32) + b1.astype(jnp.float32), 0.0)
    logits = (jnp.dot(h.astype(jnp.bfloat16), w2.astype(jnp.bfloat16),
                      preferred_element_type=jnp.float32)
              + b2.astype(jnp.float32)).astype(jnp.float32)
    logp = jax.nn.log_softmax(logits, axis=-1)
    nll = -jnp.take_along_axis(logp, y.astype(jnp.int32)[:, None], axis=-1)[:, 0]
    return jnp.mean(nll)


if __name__ == "__main__":
    # Small shapes consistent with the module's forward (NCHW image in, class labels out).
    B, C, H, W = 2, 4, 16, 16
    D_IN = C * H * W          # flattened featurizer input dim
    FEAT = 32                 # featurizer.output_dim()
    NUM_CLASSES = 8           # args.num_classes

    key = jax.random.PRNGKey(0)
    kx, ky, k1, k2, k3, k4 = jax.random.split(key, 6)

    x = jax.random.normal(kx, (B, C, H, W), dtype=jnp.float32)
    y = jax.random.randint(ky, (B,), 0, NUM_CLASSES, dtype=jnp.int32)

    # Deterministic parameter init (featurizer linear + classifier linear).
    w1 = jax.random.normal(k1, (D_IN, FEAT), dtype=jnp.float32) * (1.0 / jnp.sqrt(D_IN))
    b1 = jax.random.normal(k2, (1, FEAT), dtype=jnp.float32) * 0.01
    w2 = jax.random.normal(k3, (FEAT, NUM_CLASSES), dtype=jnp.float32) * (1.0 / jnp.sqrt(FEAT))
    b2 = jax.random.normal(k4, (1, NUM_CLASSES), dtype=jnp.float32) * 0.01

    # Parameter padding / casting is done once here (hoisted out of the loss call).
    params = prepare_baseline_params(w1, b1, w2, b2)

    loss = baseline_loss(x, y, params)
    jax.block_until_ready(loss)

    ref = _reference_loss(x, y, w1, b1, w2, b2)
    assert jnp.allclose(loss, ref, atol=2e-3, rtol=2e-3), (loss, ref)

    print("KERNEL_OK")
</pallas_src>

<mosaic_0001>
module attributes {stable_mosaic.version = 11 : i64} {
  func.func @_baseline_loss_kernel(%arg0: i32, %arg1: i32, %arg2: memref<8x1024xbf16, #tpu.memory_space<vmem>>, %arg3: memref<1024x128xbf16, #tpu.memory_space<vmem>>, %arg4: memref<1x128xf32, #tpu.memory_space<vmem>>, %arg5: memref<128x128xbf16, #tpu.memory_space<vmem>>, %arg6: memref<1x128xf32, #tpu.memory_space<vmem>>, %arg7: memref<8x1xi32, #tpu.memory_space<vmem>>, %arg8: memref<8x128xf32, #tpu.memory_space<vmem>>, %arg9: memref<8x128xf32, #tpu.memory_space<vmem>>) attributes {dimension_semantics = [#tpu.dimension_semantics<parallel>, #tpu.dimension_semantics<arbitrary>], iteration_bounds = array<i64: 1, 1>, scalar_prefetch = 0 : i64, scratch_operands = 1 : i64, tpu.core_type = #tpu.core_type<tc>, window_params = [{transform_indices = @transform_0, window_bounds = array<i64: 8, 1024>}, {pipeline_mode = #tpu.pipeline_mode<synchronous>, transform_indices = @transform_1, window_bounds = array<i64: 1024, 128>}, {pipeline_mode = #tpu.pipeline_mode<synchronous>, transform_indices = @transform_2, window_bounds = array<i64: 1, 128>}, {pipeline_mode = #tpu.pipeline_mode<synchronous>, transform_indices = @transform_3, window_bounds = array<i64: 128, 128>}, {pipeline_mode = #tpu.pipeline_mode<synchronous>, transform_indices = @transform_4, window_bounds = array<i64: 1, 128>}, {transform_indices = @transform_5, window_bounds = array<i64: 8, 1>}, {transform_indices = @transform_6, window_bounds = array<i64: 8, 128>}]} {
    %c0_i32 = arith.constant 0 : i32
    %0 = arith.cmpi eq, %arg1, %c0_i32 : i32
    %1 = arith.extui %0 : i1 to i32
    %c0_i32_0 = arith.constant 0 : i32
    %2 = arith.cmpi ne, %1, %c0_i32_0 : i32
    scf.if %2 {
      %cst_9 = arith.constant 0.000000e+00 : f32
      %15 = vector.broadcast %cst_9 : f32 to vector<8x128xf32>
      %c0_10 = arith.constant 0 : index
      %c0_11 = arith.constant 0 : index
      %16 = vector.load %arg9[%c0_10, %c0_11] : memref<8x128xf32, #tpu.memory_space<vmem>>, vector<8x128xf32>
      tpu.vector_store %arg9[%c0_10, %c0_11], %15 {strides = array<i32>} : memref<8x128xf32, #tpu.memory_space<vmem>>, vector<8x128xf32>,
    } else {
    }
    %c0 = arith.constant 0 : index
    %c0_1 = arith.constant 0 : index
    %3 = vector.load %arg2[%c0, %c0_1] : memref<8x1024xbf16, #tpu.memory_space<vmem>>, vector<8x1024xbf16>
    %c1024_i32 = arith.constant 1024 : i32
    %4 = arith.muli %arg1, %c1024_i32 : i32
    %5 = tpu.assume_multiple %4, 128 : i32
    %6 = arith.index_cast %5 : i32 to index
    %c0_2 = arith.constant 0 : index
    %7 = vector.load %arg3[%6, %c0_2] : memref<1024x128xbf16, #tpu.memory_space<vmem>>, vector<1024x128xbf16>
    %c0_3 = arith.constant 0 : index
    %c0_4 = arith.constant 0 : index
    %8 = vector.load %arg9[%c0_3, %c0_4] : memref<8x128xf32, #tpu.memory_space<vmem>>, vector<8x128xf32>
    %cst = arith.constant dense<0.000000e+00> : vector<8x128xf32>
    %9 = tpu.matmul %3, %7, %cst {dimension_numbers = #tpu.dot_dimension_numbers<[1], [0], [0], [1], [0, 0, 1, 1], [], []>} : vector<8x1024xbf16>, vector<1024x128xbf16>, vector<8x128xf32> -> vector<8x128xf32>
    %10 = arith.addf %8, %9 : vector<8x128xf32>
    %c0_5 = arith.constant 0 : index
    %c0_6 = arith.constant 0 : index
    %11 = vector.load %arg9[%c0_5, %c0_6] : memref<8x128xf32, #tpu.memory_space<vmem>>, vector<8x128xf32>
    tpu.vector_store %arg9[%c0_5, %c0_6], %10 {strides = array<i32>} : memref<8x128xf32, #tpu.memory_space<vmem>>, vector<8x128xf32>,
    %c0_i32_7 = arith.constant 0 : i32
    %12 = arith.cmpi eq, %arg1, %c0_i32_7 : i32
    %13 = arith.extui %12 : i1 to i32
    %c0_i32_8 = arith.constant 0 : i32
    %14 = arith.cmpi ne, %13, %c0_i32_8 : i32
    scf.if %14 {
      %c0_9 = arith.constant 0 : index
      %c0_10 = arith.constant 0 : index
      %15 = vector.load %arg9[%c0_9, %c0_10] : memref<8x128xf32, #tpu.memory_space<vmem>>, vector<8x128xf32>
      %c0_11 = arith.constant 0 : index
      %c0_12 = arith.constant 0 : index
      %16 = vector.load %arg4[%c0_11, %c0_12] : memref<1x128xf32, #tpu.memory_space<vmem>>, vector<1x128xf32>
      %17 = vector.broadcast %16 : vector<1x128xf32> to vector<8x128xf32>
      %18 = arith.addf %15, %17 : vector<8x128xf32>
      %cst_13 = arith.constant 0.000000e+00 : f32
      %19 = vector.broadcast %cst_13 : f32 to vector<8x128xf32>
      %20 = arith.maximumf %18, %19 : vector<8x128xf32>
      %21 = arith.truncf %20 : vector<8x128xf32> to vector<8x128xbf16>
      %c0_14 = arith.constant 0 : index
      %c0_15 = arith.constant 0 : index
      %22 = vector.load %arg5[%c0_14, %c0_15] : memref<128x128xbf16, #tpu.memory_space<vmem>>, vector<128x128xbf16>
      %cst_16 = arith.constant dense<0.000000e+00> : vector<8x128xf32>
      %23 = tpu.matmul %21, %22, %cst_16 {dimension_numbers = #tpu.dot_dimension_numbers<[1], [0], [0], [1], [0, 0, 1, 1], [], []>} : vector<8x128xbf16>, vector<128x128xbf16>, vector<8x128xf32> -> vector<8x128xf32>
      %c0_17 = arith.constant 0 : index
      %c0_18 = arith.constant 0 : index
      %24 = vector.load %arg6[%c0_17, %c0_18] : memref<1x128xf32, #tpu.memory_space<vmem>>, vector<1x128xf32>
      %25 = vector.broadcast %24 : vector<1x128xf32> to vector<8x128xf32>
      %26 = arith.addf %23, %25 : vector<8x128xf32>
      %27 = tpu.iota {dimensions = array<i32: 1>} : vector<8x128xi32>
      %c8_i32 = arith.constant 8 : i32
      %28 = vector.broadcast %c8_i32 : i32 to vector<8x128xi32>
      %29 = arith.cmpi slt, %27, %28 : vector<8x128xi32>
      %cst_19 = arith.constant -1.000000e+30 : f32
      %30 = vector.broadcast %cst_19 : f32 to vector<8x128xf32>
      %31 = arith.select %29, %26, %30 : vector<8x128xi1>, vector<8x128xf32>
      %cst_20 = arith.constant dense<0xFF800000> : vector<8xf32>
      %32 = vector.multi_reduction <maximumf>, %31, %cst_20 [1] : vector<8x128xf32> to vector<8xf32>
      %33 = vector.shape_cast %32 : vector<8xf32> to vector<8x1xf32>
      %34 = vector.broadcast %33 : vector<8x1xf32> to vector<8x128xf32>
      %35 = arith.subf %31, %34 : vector<8x128xf32>
      %36 = math.exp %35 : vector<8x128xf32>
      %cst_21 = arith.constant dense<0.000000e+00> : vector<8xf32>
      %37 = vector.multi_reduction <add>, %36, %cst_21 [1] : vector<8x128xf32> to vector<8xf32>
      %38 = vector.shape_cast %37 : vector<8xf32> to vector<8x1xf32>
      %39 = math.log %38 : vector<8x1xf32>
      %40 = vector.broadcast %39 : vector<8x1xf32> to vector<8x128xf32>
      %41 = arith.subf %35, %40 : vector<8x128xf32>
      %c0_22 = arith.constant 0 : index
      %c0_23 = arith.constant 0 : index
      %42 = vector.load %arg7[%c0_22, %c0_23] : memref<8x1xi32, #tpu.memory_space<vmem>>, vector<8x1xi32>
      %43 = vector.broadcast %42 : vector<8x1xi32> to vector<8x128xi32>
      %44 = arith.cmpi eq, %27, %43 : vector<8x128xi32>
      %cst_24 = arith.constant 0.000000e+00 : f32
      %45 = vector.broadcast %cst_24 : f32 to vector<8x128xf32>
      %46 = arith.select %44, %41, %45 : vector<8x128xi1>, vector<8x128xf32>
      %cst_25 = arith.constant dense<0.000000e+00> : vector<8xf32>
      %47 = vector.multi_reduction <add>, %46, %cst_25 [1] : vector<8x128xf32> to vector<8xf32>
      %48 = vector.shape_cast %47 : vector<8xf32> to vector<8x1xf32>
      %cst_26 = arith.constant 0.000000e+00 : f32
      %49 = vector.broadcast %cst_26 : f32 to vector<8x1xf32>
      %50 = arith.subf %49, %48 : vector<8x1xf32>
      %51 = vector.shape_cast %50 : vector<8x1xf32> to vector<8x1xf32>
      %52 = vector.broadcast %51 : vector<8x1xf32> to vector<8x128xf32>
      %c0_27 = arith.constant 0 : index
      %c0_28 = arith.constant 0 : index
      %53 = vector.load %arg8[%c0_27, %c0_28] : memref<8x128xf32, #tpu.memory_space<vmem>>, vector<8x128xf32>
      tpu.vector_store %arg8[%c0_27, %c0_28], %52 {strides = array<i32>} : memref<8x128xf32, #tpu.memory_space<vmem>>, vector<8x128xf32>,
    } else {
    }
    return
  }
  func.func @transform_0(%arg0: i32, %arg1: i32) -> (i32, i32) {
    %c0_i32 = arith.constant 0 : i32
    return %arg0, %arg1 : i32, i32
  }
  func.func @transform_1(%arg0: i32, %arg1: i32) -> (i32, i32) {
    %c0_i32 = arith.constant 0 : i32
    %c0_i32_0 = arith.constant 0 : i32
    %c0_i32_1 = arith.constant 0 : i32
    return %c0_i32, %c0_i32_0 : i32, i32
  }
  func.func @transform_2(%arg0: i32, %arg1: i32) -> (i32, i32) {
    %c0_i32 = arith.constant 0 : i32
    %c0_i32_0 = arith.constant 0 : i32
    %c0_i32_1 = arith.constant 0 : i32
    return %c0_i32, %c0_i32_0 : i32, i32
  }
  func.func @transform_3(%arg0: i32, %arg1: i32) -> (i32, i32) {
    %c0_i32 = arith.constant 0 : i32
    %c0_i32_0 = arith.constant 0 : i32
    %c0_i32_1 = arith.constant 0 : i32
    return %c0_i32, %c0_i32_0 : i32, i32
  }
  func.func @transform_4(%arg0: i32, %arg1: i32) -> (i32, i32) {
    %c0_i32 = arith.constant 0 : i32
    %c0_i32_0 = arith.constant 0 : i32
    %c0_i32_1 = arith.constant 0 : i32
    return %c0_i32, %c0_i32_0 : i32, i32
  }
  func.func @transform_5(%arg0: i32, %arg1: i32) -> (i32, i32) {
    %c0_i32 = arith.constant 0 : i32
    %c0_i32_0 = arith.constant 0 : i32
    return %arg0, %c0_i32 : i32, i32
  }
  func.func @transform_6(%arg0: i32, %arg1: i32) -> (i32, i32) {
    %c0_i32 = arith.constant 0 : i32
    %c0_i32_0 = arith.constant 0 : i32
    return %arg0, %c0_i32 : i32, i32
  }
}

</mosaic_0001>

<llo_original>
// kernel: tpu_custom_call.1
$region0: #{tpu_custom_call.1}
  #allocation0 [shape = 'u32[]', space=smem, size = 0x4, offset = 0x4, fixed_abs, tag = 'smem constant byte address 0x4 - core index']
  #allocation1 [shape = 'u32[144,128]{1,0:T(1,128)}', space=vmem, size = 0x12000, scoped, tag = 'internal scratch']
  #allocation2 [shape = 'f32[8,128]{1,0:T(8,128)}', space=vmem, size = 0x1000, scoped, tag = 'scratch operand']
  %s0 = inlined_call_operand.hbm [shape: bf16[8,1024], index: 0, kind: input, shape index: {}]
  %s1 = inlined_call_operand.hbm [shape: bf16[1024,128], index: 1, kind: input, shape index: {}]
  %s2 = inlined_call_operand.vmem [shape: f32[1,128], index: 2, kind: input, shape index: {}]
  %s3 = inlined_call_operand.hbm [shape: bf16[128,128], index: 3, kind: input, shape index: {}]
  %s4 = inlined_call_operand.vmem [shape: f32[1,128], index: 4, kind: input, shape index: {}]
  %s5 = inlined_call_operand.vmem [shape: s32[8,1], index: 5, kind: input, shape index: {}]
  %s6 = inlined_call_operand.hbm [shape: f32[8,128], index: 6, kind: output, shape index: {}]
  %s7 = sld [smem:[#allocation0]]
  $region54: #{tpu_custom_call.1} parent=0
    _
  %s9 = ssub.s32 1, %s7
  %s10 = scalar_select 0, %s9, %s7
  $region1: #{tpu_custom_call.1} parent=0
    #allocation3 [shape = 'u8[16384]{0}', space=vmem, size = 0x4000, scoped, tag = 'input window, operand 0, single buffered']
    #allocation4 [shape = 's32[1]{0}', space=sflag, size = 0x4, scoped, tag = 'scoped memory for tpu_custom_call.1']
    #allocation5 [shape = 's32[1]{0}', space=sflag, size = 0x4, scoped, tag = 'scoped memory for tpu_custom_call.1']
    #allocation6 [shape = 'u8[262144]{0}', space=vmem, size = 0x40000, scoped, tag = 'input window, operand 1, single buffered']
    #allocation7 [shape = 's32[1]{0}', space=sflag, size = 0x4, scoped, tag = 'scoped memory for tpu_custom_call.1']
    #allocation8 [shape = 'u8[32768]{0}', space=vmem, size = 0x8000, scoped, tag = 'input window, operand 3, single buffered']
    #allocation9 [shape = 'u8[4096]{0}', space=vmem, size = 0x1000, scoped, tag = 'output window, operand 0, single buffered']
    %11 = vsyncpa [#allocation4], 0
    %12 = vsyncpa [#allocation7], 0
    %13 = vsyncpa [#allocation5], 0
    // Predicated region
    $region2: #{tpu_custom_call.1} parent=1 // pred_check
      _
    $region3: #{tpu_custom_call.1} parent=1 // pred_check_branch
      %15 = sbr.rel (0) target = $region5
    $region4: #{tpu_custom_call.1} parent=1 // pred_region
      %s17 = ssub.s32 512, 512
      %18 = vsyncadd [#allocation4], %s17
      %s20 = sshll.u32 [#allocation3], 4
      %s21 = int_to_ptr.vmem [resolvable:$true] %s20
      %23 = dma.hbm_to_vmem [thread:$0]  %s0, 512, %s21, [#allocation4]
    $region5: #{tpu_custom_call.1} parent=1 // pred_fallthru
      _
    // Predicated region
    $region6: #{tpu_custom_call.1} parent=1 // pred_check
      _
    $region7: #{tpu_custom_call.1} parent=1 // pred_check_branch
      %25 = sbr.rel (0) target = $region9
    $region8: #{tpu_custom_call.1} parent=1 // pred_region
      %s27 = ssub.s32 8192, 8192
      %28 = vsyncadd [#allocation7], %s27
      %s29 = sshll.u32 [#allocation6], 4
      %s30 = int_to_ptr.vmem [resolvable:$true] %s29
      %35 = dma.hbm_to_vmem [thread:$0]  %s1, 8192, %s30, [#allocation7], 64, 64, 4
    $region9: #{tpu_custom_call.1} parent=1 // pred_fallthru
      _
    // Predicated region
    $region10: #{tpu_custom_call.1} parent=1 // pred_check
      _
    $region11: #{tpu_custom_call.1} parent=1 // pred_check_branch
      %37 = sbr.rel (0) target = $region13
    $region12: #{tpu_custom_call.1} parent=1 // pred_region
      _
    $region13: #{tpu_custom_call.1} parent=1 // pred_fallthru
      _
    // Predicated region
    $region14: #{tpu_custom_call.1} parent=1 // pred_check
      _
    $region15: #{tpu_custom_call.1} parent=1 // pred_check_branch
      %39 = sbr.rel (0) target = $region17
    $region16: #{tpu_custom_call.1} parent=1 // pred_region
      %s41 = ssub.s32 1024, 1024
      %42 = vsyncadd [#allocation7], %s41
      %s43 = sshll.u32 [#allocation8], 4
      %s44 = int_to_ptr.vmem [resolvable:$true] %s43
      %49 = dma.hbm_to_vmem [thread:$0]  %s3, 1024, %s44, [#allocation7], 64, 64, 4
    $region17: #{tpu_custom_call.1} parent=1 // pred_fallthru
      _
    // Predicated region
    $region18: #{tpu_custom_call.1} parent=1 // pred_check
      _
    $region19: #{tpu_custom_call.1} parent=1 // pred_check_branch
      %51 = sbr.rel (0) target = $region21
    $region20: #{tpu_custom_call.1} parent=1 // pred_region
      _
    $region21: #{tpu_custom_call.1} parent=1 // pred_fallthru
      _
    // Predicated region
    $region22: #{tpu_custom_call.1} parent=1 // pred_check
      _
    $region23: #{tpu_custom_call.1} parent=1 // pred_check_branch
      %53 = sbr.rel (0) target = $region25
    $region24: #{tpu_custom_call.1} parent=1 // pred_region
      _
    $region25: #{tpu_custom_call.1} parent=1 // pred_fallthru
      _
    // Predicated region
    $region26: #{tpu_custom_call.1} parent=1 // pred_check
      _
    $region27: #{tpu_custom_call.1} parent=1 // pred_check_branch
      %55 = sbr.rel (0) target = $region29
    $region28: #{tpu_custom_call.1} parent=1 // pred_region
      %56 = dma.done [#allocation4], 512
    $region29: #{tpu_custom_call.1} parent=1 // pred_fallthru
      _
    // Predicated region
    $region30: #{tpu_custom_call.1} parent=1 // pred_check
      _
    $region31: #{tpu_custom_call.1} parent=1 // pred_check_branch
      %58 = sbr.rel (0) target = $region33
    $region32: #{tpu_custom_call.1} parent=1 // pred_region
      %59 = dma.done [#allocation7], 8192
    $region33: #{tpu_custom_call.1} parent=1 // pred_fallthru
      _
    // Predicated region
    $region34: #{tpu_custom_call.1} parent=1 // pred_check
      _
    $region35: #{tpu_custom_call.1} parent=1 // pred_check_branch
      %61 = sbr.rel (0) target = $region37
    $region36: #{tpu_custom_call.1} parent=1 // pred_region
      %62 = dma.done [#allocation7], 1024
    $region37: #{tpu_custom_call.1} parent=1 // pred_fallthru
      _
    %p64 = scmp.eq.s32.totalorder 0, 0
    // Predicated region
    $region38: #{tpu_custom_call.1} parent=1 // pred_check
      %p65 = pneg %p64
    $region39: #{tpu_custom_call.1} parent=1 // pred_check_branch
      %67 = sbr.rel (%p65) target = $region41
    $region40: #{tpu_custom_call.1} parent=1 // pred_region
      %68 = vst [vmem:[#allocation2] sm:$0xff] 0.0
    $region41: #{tpu_custom_call.1} parent=1 // pred_fallthru
      _
    %v69 = vld [vmem:[#allocation3] sm:$0xff]
    %v70 = vld [vmem:[#allocation3 + $0x8] sm:$0xff]
    %v71 = vld [vmem:[#allocation3 + $0x10] sm:$0xff]
    %v72 = vld [vmem:[#allocation3 + $0x18] sm:$0xff]
    %s73 = smul.u32 0, 1024
    %s74 = sshra.s32 %s73, 3
    %s75 = sand.u32 %s73, 7
    %s76 = smul.addr %s74, 4
    %s77 = scalar_lea.vmem [#allocation6], %s76
    %v78 = vld [vmem:[%s77] sm:$0xf]
    %v79 = vld [vmem:[%s77 + $0x4] sm:$0xf]
    %v80 = vld [vmem:[%s77 + $0x8] sm:$0xf]
    %v81 = vld [vmem:[%s77 + $0xc] sm:$0xf]
    %v82 = vld [vmem:[%s77 + $0x10] sm:$0xf]
    %v83 = vld [vmem:[%s77 + $0x14] sm:$0xf]
    %v84 = vld [vmem:[%s77 + $0x18] sm:$0xf]
    %v85 = vld [vmem:[%s77 + $0x1c] sm:$0xf]
    %v86 = vld [vmem:[%s77 + $0x20] sm:$0xf]
    %v87 = vld [vmem:[%s77 + $0x24] sm:$0xf]
    %v88 = vld [vmem:[%s77 + $0x28] sm:$0xf]
    %v89 = vld [vmem:[%s77 + $0x2c] sm:$0xf]
    %v90 = vld [vmem:[%s77 + $0x30] sm:$0xf]
    %v91 = vld [vmem:[%s77 + $0x34] sm:$0xf]
    %v92 = vld [vmem:[%s77 + $0x38] sm:$0xf]
    %v93 = vld [vmem:[%s77 + $0x3c] sm:$0xf]
    %v94 = vld [vmem:[%s77 + $0x40] sm:$0xf]
    %v95 = vld [vmem:[%s77 + $0x44] sm:$0xf]
    %v96 = vld [vmem:[%s77 + $0x48] sm:$0xf]
    %v97 = vld [vmem:[%s77 + $0x4c] sm:$0xf]
    %v98 = vld [vmem:[%s77 + $0x50] sm:$0xf]
    %v99 = vld [vmem:[%s77 + $0x54] sm:$0xf]
    %v100 = vld [vmem:[%s77 + $0x58] sm:$0xf]
    %v101 = vld [vmem:[%s77 + $0x5c] sm:$0xf]
    %v102 = vld [vmem:[%s77 + $0x60] sm:$0xf]
    %v103 = vld [vmem:[%s77 + $0x64] sm:$0xf]
    %v104 = vld [vmem:[%s77 + $0x68] sm:$0xf]
    %v105 = vld [vmem:[%s77 + $0x6c] sm:$0xf]
    %v106 = vld [vmem:[%s77 + $0x70] sm:$0xf]
    %v107 = vld [vmem:[%s77 + $0x74] sm:$0xf]
    %v108 = vld [vmem:[%s77 + $0x78] sm:$0xf]
    %v109 = vld [vmem:[%s77 + $0x7c] sm:$0xf]
    %v110 = vld [vmem:[%s77 + $0x80] sm:$0xf]
    %v111 = vld [vmem:[%s77 + $0x84] sm:$0xf]
    %v112 = vld [vmem:[%s77 + $0x88] sm:$0xf]
    %v113 = vld [vmem:[%s77 + $0x8c] sm:$0xf]
    %v114 = vld [vmem:[%s77 + $0x90] sm:$0xf]
    %v115 = vld [vmem:[%s77 + $0x94] sm:$0xf]
    %v116 = vld [vmem:[%s77 + $0x98] sm:$0xf]
    %v117 = vld [vmem:[%s77 + $0x9c] sm:$0xf]
    %v118 = vld [vmem:[%s77 + $0xa0] sm:$0xf]
    %v119 = vld [vmem:[%s77 + $0xa4] sm:$0xf]
    %v120 = vld [vmem:[%s77 + $0xa8] sm:$0xf]
    %v121 = vld [vmem:[%s77 + $0xac] sm:$0xf]
    %v122 = vld [vmem:[%s77 + $0xb0] sm:$0xf]
    %v123 = vld [vmem:[%s77 + $0xb4] sm:$0xf]
    %v124 = vld [vmem:[%s77 + $0xb8] sm:$0xf]
    %v125 = vld [vmem:[%s77 + $0xbc] sm:$0xf]
    %v126 = vld [vmem:[%s77 + $0xc0] sm:$0xf]
    %v127 = vld [vmem:[%s77 + $0xc4] sm:$0xf]
    %v128 = vld [vmem:[%s77 + $0xc8] sm:$0xf]
    %v129 = vld [vmem:[%s77 + $0xcc] sm:$0xf]
    %v130 = vld [vmem:[%s77 + $0xd0] sm:$0xf]
    %v131 = vld [vmem:[%s77 + $0xd4] sm:$0xf]
    %v132 = vld [vmem:[%s77 + $0xd8] sm:$0xf]
    %v133 = vld [vmem:[%s77 + $0xdc] sm:$0xf]
    %v134 = vld [vmem:[%s77 + $0xe0] sm:$0xf]
    %v135 = vld [vmem:[%s77 + $0xe4] sm:$0xf]
    %v136 = vld [vmem:[%s77 + $0xe8] sm:$0xf]
    %v137 = vld [vmem:[%s77 + $0xec] sm:$0xf]
    %v138 = vld [vmem:[%s77 + $0xf0] sm:$0xf]
    %v139 = vld [vmem:[%s77 + $0xf4] sm:$0xf]
    %v140 = vld [vmem:[%s77 + $0xf8] sm:$0xf]
    %v141 = vld [vmem:[%s77 + $0xfc] sm:$0xf]
    %v142 = vld [vmem:[%s77 + $0x100] sm:$0xf]
    %v143 = vld [vmem:[%s77 + $0x104] sm:$0xf]
    %v144 = vld [vmem:[%s77 + $0x108] sm:$0xf]
    %v145 = vld [vmem:[%s77 + $0x10c] sm:$0xf]
    %v146 = vld [vmem:[%s77 + $0x110] sm:$0xf]
    %v147 = vld [vmem:[%s77 + $0x114] sm:$0xf]
    %v148 = vld [vmem:[%s77 + $0x118] sm:$0xf]
    %v149 = vld [vmem:[%s77 + $0x11c] sm:$0xf]
    %v150 = vld [vmem:[%s77 + $0x120] sm:$0xf]
    %v151 = vld [vmem:[%s77 + $0x124] sm:$0xf]
    %v152 = vld [vmem:[%s77 + $0x128] sm:$0xf]
    %v153 = vld [vmem:[%s77 + $0x12c] sm:$0xf]
    %v154 = vld [vmem:[%s77 + $0x130] sm:$0xf]
    %v155 = vld [vmem:[%s77 + $0x134] sm:$0xf]
    %v156 = vld [vmem:[%s77 + $0x138] sm:$0xf]
    %v157 = vld [vmem:[%s77 + $0x13c] sm:$0xf]
    %v158 = vld [vmem:[%s77 + $0x140] sm:$0xf]
    %v159 = vld [vmem:[%s77 + $0x144] sm:$0xf]
    %v160 = vld [vmem:[%s77 + $0x148] sm:$0xf]
    %v161 = vld [vmem:[%s77 + $0x14c] sm:$0xf]
    %v162 = vld [vmem:[%s77 + $0x150] sm:$0xf]
    %v163 = vld [vmem:[%s77 + $0x154] sm:$0xf]
    %v164 = vld [vmem:[%s77 + $0x158] sm:$0xf]
    %v165 = vld [vmem:[%s77 + $0x15c] sm:$0xf]
    %v166 = vld [vmem:[%s77 + $0x160] sm:$0xf]
    %v167 = vld [vmem:[%s77 + $0x164] sm:$0xf]
    %v168 = vld [vmem:[%s77 + $0x168] sm:$0xf]
    %v169 = vld [vmem:[%s77 + $0x16c] sm:$0xf]
    %v170 = vld [vmem:[%s77 + $0x170] sm:$0xf]
    %v171 = vld [vmem:[%s77 + $0x174] sm:$0xf]
    %v172 = vld [vmem:[%s77 + $0x178] sm:$0xf]
    %v173 = vld [vmem:[%s77 + $0x17c] sm:$0xf]
    %v174 = vld [vmem:[%s77 + $0x180] sm:$0xf]
    %v175 = vld [vmem:[%s77 + $0x184] sm:$0xf]
    %v176 = vld [vmem:[%s77 + $0x188] sm:$0xf]
    %v177 = vld [vmem:[%s77 + $0x18c] sm:$0xf]
    %v178 = vld [vmem:[%s77 + $0x190] sm:$0xf]
    %v179 = vld [vmem:[%s77 + $0x194] sm:$0xf]
    %v180 = vld [vmem:[%s77 + $0x198] sm:$0xf]
    %v181 = vld [vmem:[%s77 + $0x19c] sm:$0xf]
    %v182 = vld [vmem:[%s77 + $0x1a0] sm:$0xf]
    %v183 = vld [vmem:[%s77 + $0x1a4] sm:$0xf]
    %v184 = vld [vmem:[%s77 + $0x1a8] sm:$0xf]
    %v185 = vld [vmem:[%s77 + $0x1ac] sm:$0xf]
    %v186 = vld [vmem:[%s77 + $0x1b0] sm:$0xf]
    %v187 = vld [vmem:[%s77 + $0x1b4] sm:$0xf]
    %v188 = vld [vmem:[%s77 + $0x1b8] sm:$0xf]
    %v189 = vld [vmem:[%s77 + $0x1bc] sm:$0xf]
    %v190 = vld [vmem:[%s77 + $0x1c0] sm:$0xf]
    %v191 = vld [vmem:[%s77 + $0x1c4] sm:$0xf]
    %v192 = vld [vmem:[%s77 + $0x1c8] sm:$0xf]
    %v193 = vld [vmem:[%s77 + $0x1cc] sm:$0xf]
    %v194 = vld [vmem:[%s77 + $0x1d0] sm:$0xf]
    %v195 = vld [vmem:[%s77 + $0x1d4] sm:$0xf]
    %v196 = vld [vmem:[%s77 + $0x1d8] sm:$0xf]
    %v197 = vld [vmem:[%s77 + $0x1dc] sm:$0xf]
    %v198 = vld [vmem:[%s77 + $0x1e0] sm:$0xf]
    %v199 = vld [vmem:[%s77 + $0x1e4] sm:$0xf]
    %v200 = vld [vmem:[%s77 + $0x1e8] sm:$0xf]
    %v201 = vld [vmem:[%s77 + $0x1ec] sm:$0xf]
    %v202 = vld [vmem:[%s77 + $0x1f0] sm:$0xf]
    %v203 = vld [vmem:[%s77 + $0x1f4] sm:$0xf]
    %v204 = vld [vmem:[%s77 + $0x1f8] sm:$0xf]
    %v205 = vld [vmem:[%s77 + $0x1fc] sm:$0xf]
    %v206 = vld [vmem:[#allocation2] sm:$0xff]
    %v211 = vunpack.c.l.b16 %v69
    %v212 = vunpack.c.h.b16 %v69
    %v213 = vunpack.c.l.b16 %v70
    %v214 = vunpack.c.h.b16 %v70
    %v215 = vunpack.c.l.b16 %v71
    %v216 = vunpack.c.h.b16 %v71
    %v217 = vunpack.c.l.b16 %v72
    %v218 = vunpack.c.h.b16 %v72
    %v219 = vpack.c.b16 %v211, %v211
    %v220 = vpack.c.b16 %v212, %v212
    %v221 = vpack.c.b16 %v213, %v213
    %v222 = vpack.c.b16 %v214, %v214
    %v223 = vpack.c.b16 %v215, %v215
    %v224 = vpack.c.b16 %v216, %v216
    %v225 = vpack.c.b16 %v217, %v217
    %v226 = vpack.c.b16 %v218, %v218
    %v363 = vunpack.c.l.b16 %v78
    %v364 = vunpack.c.l.b16 %v79
    %v365 = vunpack.c.l.b16 %v80
    %v366 = vunpack.c.l.b16 %v81
    %v367 = vunpack.c.l.b16 %v82
    %v368 = vunpack.c.l.b16 %v83
    %v369 = vunpack.c.l.b16 %v84
    %v370 = vunpack.c.l.b16 %v85
    %v371 = vunpack.c.l.b16 %v86
    %v372 = vunpack.c.l.b16 %v87
    %v373 = vunpack.c.l.b16 %v88
    %v374 = vunpack.c.l.b16 %v89
    %v375 = vunpack.c.l.b16 %v90
    %v376 = vunpack.c.l.b16 %v91
    %v377 = vunpack.c.l.b16 %v92
    %v378 = vunpack.c.l.b16 %v93
    %v379 = vunpack.c.l.b16 %v94
    %v380 = vunpack.c.l.b16 %v95
    %v381 = vunpack.c.l.b16 %v96
    %v382 = vunpack.c.l.b16 %v97
    %v383 = vunpack.c.l.b16 %v98
    %v384 = vunpack.c.l.b16 %v99
    %v385 = vunpack.c.l.b16 %v100
    %v386 = vunpack.c.l.b16 %v101
    %v387 = vunpack.c.l.b16 %v102
    %v388 = vunpack.c.l.b16 %v103
    %v389 = vunpack.c.l.b16 %v104
    %v390 = vunpack.c.l.b16 %v105
    %v391 = vunpack.c.l.b16 %v106
    %v392 = vunpack.c.l.b16 %v107
    %v393 = vunpack.c.l.b16 %v108
    %v394 = vunpack.c.l.b16 %v109
    %v395 = vunpack.c.l.b16 %v110
    %v396 = vunpack.c.l.b16 %v111
    %v397 = vunpack.c.l.b16 %v112
    %v398 = vunpack.c.l.b16 %v113
    %v399 = vunpack.c.l.b16 %v114
    %v400 = vunpack.c.l.b16 %v115
    %v401 = vunpack.c.l.b16 %v116
    %v402 = vunpack.c.l.b16 %v117
    %v403 = vunpack.c.l.b16 %v118
    %v404 = vunpack.c.l.b16 %v119
    %v405 = vunpack.c.l.b16 %v120
    %v406 = vunpack.c.l.b16 %v121
    %v407 = vunpack.c.l.b16 %v122
    %v408 = vunpack.c.l.b16 %v123
    %v409 = vunpack.c.l.b16 %v124
    %v410 = vunpack.c.l.b16 %v125
    %v411 = vunpack.c.l.b16 %v126
    %v412 = vunpack.c.l.b16 %v127
    %v413 = vunpack.c.l.b16 %v128
    %v414 = vunpack.c.l.b16 %v129
    %v415 = vunpack.c.l.b16 %v130
    %v416 = vunpack.c.l.b16 %v131
    %v417 = vunpack.c.l.b16 %v132
    %v418 = vunpack.c.l.b16 %v133
    %v419 = vunpack.c.l.b16 %v134
    %v420 = vunpack.c.l.b16 %v135
    %v421 = vunpack.c.l.b16 %v136
    %v422 = vunpack.c.l.b16 %v137
    %v423 = vunpack.c.l.b16 %v138
    %v424 = vunpack.c.l.b16 %v139
    %v425 = vunpack.c.l.b16 %v140
    %v426 = vunpack.c.l.b16 %v141
    %v427 = vunpack.c.l.b16 %v142
    %v428 = vunpack.c.l.b16 %v143
    %v429 = vunpack.c.l.b16 %v144
    %v430 = vunpack.c.l.b16 %v145
    %v431 = vunpack.c.l.b16 %v146
    %v432 = vunpack.c.l.b16 %v147
    %v433 = vunpack.c.l.b16 %v148
    %v434 = vunpack.c.l.b16 %v149
    %v435 = vunpack.c.l.b16 %v150
    %v436 = vunpack.c.l.b16 %v151
    %v437 = vunpack.c.l.b16 %v152
    %v438 = vunpack.c.l.b16 %v153
    %v439 = vunpack.c.l.b16 %v154
    %v440 = vunpack.c.l.b16 %v155
    %v441 = vunpack.c.l.b16 %v156
    %v442 = vunpack.c.l.b16 %v157
    %v443 = vunpack.c.l.b16 %v158
    %v444 = vunpack.c.l.b16 %v159
    %v445 = vunpack.c.l.b16 %v160
    %v446 = vunpack.c.l.b16 %v161
    %v447 = vunpack.c.l.b16 %v162
    %v448 = vunpack.c.l.b16 %v163
    %v449 = vunpack.c.l.b16 %v164
    %v450 = vunpack.c.l.b16 %v165
    %v451 = vunpack.c.l.b16 %v166
    %v452 = vunpack.c.l.b16 %v167
    %v453 = vunpack.c.l.b16 %v168
    %v454 = vunpack.c.l.b16 %v169
    %v455 = vunpack.c.l.b16 %v170
    %v456 = vunpack.c.l.b16 %v171
    %v457 = vunpack.c.l.b16 %v172
    %v458 = vunpack.c.l.b16 %v173
    %v459 = vunpack.c.l.b16 %v174
    %v460 = vunpack.c.l.b16 %v175
    %v461 = vunpack.c.l.b16 %v176
    %v462 = vunpack.c.l.b16 %v177
    %v463 = vunpack.c.l.b16 %v178
    %v464 = vunpack.c.l.b16 %v179
    %v465 = vunpack.c.l.b16 %v180
    %v466 = vunpack.c.l.b16 %v181
    %v467 = vunpack.c.l.b16 %v182
    %v468 = vunpack.c.l.b16 %v183
    %v469 = vunpack.c.l.b16 %v184
    %v470 = vunpack.c.l.b16 %v185
    %v471 = vunpack.c.l.b16 %v186
    %v472 = vunpack.c.l.b16 %v187
    %v473 = vunpack.c.l.b16 %v188
    %v474 = vunpack.c.l.b16 %v189
    %v475 = vunpack.c.l.b16 %v190
    %v476 = vunpack.c.l.b16 %v191
    %v477 = vunpack.c.l.b16 %v192
    %v478 = vunpack.c.l.b16 %v193
    %v479 = vunpack.c.l.b16 %v194
    %v480 = vunpack.c.l.b16 %v195
    %v481 = vunpack.c.l.b16 %v196
    %v482 = vunpack.c.l.b16 %v197
    %v483 = vunpack.c.l.b16 %v198
    %v484 = vunpack.c.l.b16 %v199
    %v485 = vunpack.c.l.b16 %v200
    %v486 = vunpack.c.l.b16 %v201
    %v487 = vunpack.c.l.b16 %v202
    %v488 = vunpack.c.l.b16 %v203
    %v489 = vunpack.c.l.b16 %v204
    %v490 = vunpack.c.l.b16 %v205
    %v491 = vpack.c.b16 %v364, %v363
    %v492 = vpack.c.b16 %v366, %v365
    %v493 = vpack.c.b16 %v368, %v367
    %v494 = vpack.c.b16 %v370, %v369
    %v495 = vpack.c.b16 %v372, %v371
    %v496 = vpack.c.b16 %v374, %v373
    %v497 = vpack.c.b16 %v376, %v375
    %v498 = vpack.c.b16 %v378, %v377
    %v499 = vpack.c.b16 %v380, %v379
    %v500 = vpack.c.b16 %v382, %v381
    %v501 = vpack.c.b16 %v384, %v383
    %v502 = vpack.c.b16 %v386, %v385
    %v503 = vpack.c.b16 %v388, %v387
    %v504 = vpack.c.b16 %v390, %v389
    %v505 = vpack.c.b16 %v392, %v391
    %v506 = vpack.c.b16 %v394, %v393
    %v507 = vpack.c.b16 %v396, %v395
    %v508 = vpack.c.b16 %v398, %v397
    %v509 = vpack.c.b16 %v400, %v399
    %v510 = vpack.c.b16 %v402, %v401
    %v511 = vpack.c.b16 %v404, %v403
    %v512 = vpack.c.b16 %v406, %v405
    %v513 = vpack.c.b16 %v408, %v407
    %v514 = vpack.c.b16 %v410, %v409
    %v515 = vpack.c.b16 %v412, %v411
    %v516 = vpack.c.b16 %v414, %v413
    %v517 = vpack.c.b16 %v416, %v415
    %v518 = vpack.c.b16 %v418, %v417
    %v519 = vpack.c.b16 %v420, %v419
    %v520 = vpack.c.b16 %v422, %v421
    %v521 = vpack.c.b16 %v424, %v423
    %v522 = vpack.c.b16 %v426, %v425
    %v523 = vpack.c.b16 %v428, %v427
    %v524 = vpack.c.b16 %v430, %v429
    %v525 = vpack.c.b16 %v432, %v431
    %v526 = vpack.c.b16 %v434, %v433
    %v527 = vpack.c.b16 %v436, %v435
    %v528 = vpack.c.b16 %v438, %v437
    %v529 = vpack.c.b16 %v440, %v439
    %v530 = vpack.c.b16 %v442, %v441
    %v531 = vpack.c.b16 %v444, %v443
    %v532 = vpack.c.b16 %v446, %v445
    %v533 = vpack.c.b16 %v448, %v447
    %v534 = vpack.c.b16 %v450, %v449
    %v535 = vpack.c.b16 %v452, %v451
    %v536 = vpack.c.b16 %v454, %v453
    %v537 = vpack.c.b16 %v456, %v455
    %v538 = vpack.c.b16 %v458, %v457
    %v539 = vpack.c.b16 %v460, %v459
    %v540 = vpack.c.b16 %v462, %v461
    %v541 = vpack.c.b16 %v464, %v463
    %v542 = vpack.c.b16 %v466, %v465
    %v543 = vpack.c.b16 %v468, %v467
    %v544 = vpack.c.b16 %v470, %v469
    %v545 = vpack.c.b16 %v472, %v471
    %v546 = vpack.c.b16 %v474, %v473
    %v547 = vpack.c.b16 %v476, %v475
    %v548 = vpack.c.b16 %v478, %v477
    %v549 = vpack.c.b16 %v480, %v479
    %v550 = vpack.c.b16 %v482, %v481
    %v551 = vpack.c.b16 %v484, %v483
    %v552 = vpack.c.b16 %v486, %v485
    %v553 = vpack.c.b16 %v488, %v487
    %v554 = vpack.c.b16 %v490, %v489
    %619 = vmatprep.subr.bf16.mxu0 0
    %620 = vmatpush1.bf16.msra.mxu0 %v491
    %621 = vmatprep.subr.bf16.mxu0 0
    %622 = vmatpush1.bf16.msra.mxu0 %v492
    %623 = vmatprep.subr.bf16.mxu0 0
    %624 = vmatpush1.bf16.msra.mxu0 %v493
    %625 = vmatprep.subr.bf16.mxu0 0
    %626 = vmatpush1.bf16.msra.mxu0 %v494
    %627 = vmatprep.subr.bf16.mxu0 0
    %628 = vmatpush1.bf16.msra.mxu0 %v495
    %629 = vmatprep.subr.bf16.mxu0 0
    %630 = vmatpush1.bf16.msra.mxu0 %v496
    %631 = vmatprep.subr.bf16.mxu0 0
    %632 = vmatpush1.bf16.msra.mxu0 %v497
    %633 = vmatprep.subr.bf16.mxu0 0
    %634 = vmatpush1.bf16.msra.mxu0 %v498
    %635 = vmatprep.subr.bf16.mxu0 0
    %636 = vmatpush1.bf16.msra.mxu0 %v499
    %637 = vmatprep.subr.bf16.mxu0 0
    %638 = vmatpush1.bf16.msra.mxu0 %v500
    %639 = vmatprep.subr.bf16.mxu0 0
    %640 = vmatpush1.bf16.msra.mxu0 %v501
    %641 = vmatprep.subr.bf16.mxu0 0
    %642 = vmatpush1.bf16.msra.mxu0 %v502
    %643 = vmatprep.subr.bf16.mxu0 0
    %644 = vmatpush1.bf16.msra.mxu0 %v503
    %645 = vmatprep.subr.bf16.mxu0 0
    %646 = vmatpush1.bf16.msra.mxu0 %v504
    %647 = vmatprep.subr.bf16.mxu0 0
    %648 = vmatpush1.bf16.msra.mxu0 %v505
    %649 = vmatprep.subr.bf16.mxu0 0
    %650 = vmatpush1.bf16.msra.mxu0 %v506
    %651 = vmatprep.mubr.bf16.mxu0 %v220
    %652 = vmatmul.mubr.bf16.gmra.mrb[0].mxu0 %v219
    %v653 = vpop.f32.mrb[0].mxu0
    %v654 = vadd.f32 0.0, %v653
    %v655 = vpop.f32.mrb[0].mxu0
    %v656 = vpop.f32.mrb[0].mxu0
    %v657 = vpop.f32.mrb[0].mxu0
    %658 = vdwg.mxu0
    %659 = vmatprep.subr.bf16.mxu0 0
    %660 = vmatpush1.bf16.msra.mxu0 %v507
    %661 = vmatprep.subr.bf16.mxu0 0
    %662 = vmatpush1.bf16.msra.mxu0 %v508
    %663 = vmatprep.subr.bf16.mxu0 0
    %664 = vmatpush1.bf16.msra.mxu0 %v509
    %665 = vmatprep.subr.bf16.mxu0 0
    %666 = vmatpush1.bf16.msra.mxu0 %v510
    %667 = vmatprep.subr.bf16.mxu0 0
    %668 = vmatpush1.bf16.msra.mxu0 %v511
    %669 = vmatprep.subr.bf16.mxu0 0
    %670 = vmatpush1.bf16.msra.mxu0 %v512
    %671 = vmatprep.subr.bf16.mxu0 0
    %672 = vmatpush1.bf16.msra.mxu0 %v513
    %673 = vmatprep.subr.bf16.mxu0 0
    %674 = vmatpush1.bf16.msra.mxu0 %v514
    %675 = vmatprep.subr.bf16.mxu0 0
    %676 = vmatpush1.bf16.msra.mxu0 %v515
    %677 = vmatprep.subr.bf16.mxu0 0
    %678 = vmatpush1.bf16.msra.mxu0 %v516
    %679 = vmatprep.subr.bf16.mxu0 0
    %680 = vmatpush1.bf16.msra.mxu0 %v517
    %681 = vmatprep.subr.bf16.mxu0 0
    %682 = vmatpush1.bf16.msra.mxu0 %v518
    %683 = vmatprep.subr.bf16.mxu0 0
    %684 = vmatpush1.bf16.msra.mxu0 %v519
    %685 = vmatprep.subr.bf16.mxu0 0
    %686 = vmatpush1.bf16.msra.mxu0 %v520
    %687 = vmatprep.subr.bf16.mxu0 0
    %688 = vmatpush1.bf16.msra.mxu0 %v521
    %689 = vmatprep.subr.bf16.mxu0 0
    %690 = vmatpush1.bf16.msra.mxu0 %v522
    %691 = vmatprep.mubr.bf16.mxu0 %v222
    %692 = vmatmul.mubr.bf16.gmra.mrb[0].mxu0 %v221
    %v693 = vpop.f32.mrb[0].mxu0
    %v694 = vadd.f32 %v654, %v693
    %v695 = vpop.f32.mrb[0].mxu0
    %v696 = vpop.f32.mrb[0].mxu0
    %v697 = vpop.f32.mrb[0].mxu0
    %698 = vdwg.mxu0
    %699 = vmatprep.subr.bf16.mxu0 0
    %700 = vmatpush1.bf16.msra.mxu0 %v523
    %701 = vmatprep.subr.bf16.mxu0 0
    %702 = vmatpush1.bf16.msra.mxu0 %v524
    %703 = vmatprep.subr.bf16.mxu0 0
    %704 = vmatpush1.bf16.msra.mxu0 %v525
    %705 = vmatprep.subr.bf16.mxu0 0
    %706 = vmatpush1.bf16.msra.mxu0 %v526
    %707 = vmatprep.subr.bf16.mxu0 0
    %708 = vmatpush1.bf16.msra.mxu0 %v527
    %709 = vmatprep.subr.bf16.mxu0 0
    %710 = vmatpush1.bf16.msra.mxu0 %v528
    %711 = vmatprep.subr.bf16.mxu0 0
    %712 = vmatpush1.bf16.msra.mxu0 %v529
    %713 = vmatprep.subr.bf16.mxu0 0
    %714 = vmatpush1.bf16.msra.mxu0 %v530
    %715 = vmatprep.subr.bf16.mxu0 0
    %716 = vmatpush1.bf16.msra.mxu0 %v531
    %717 = vmatprep.subr.bf16.mxu0 0
    %718 = vmatpush1.bf16.msra.mxu0 %v532
    %719 = vmatprep.subr.bf16.mxu0 0
    %720 = vmatpush1.bf16.msra.mxu0 %v533
    %721 = vmatprep.subr.bf16.mxu0 0
    %722 = vmatpush1.bf16.msra.mxu0 %v534
    %723 = vmatprep.subr.bf16.mxu0 0
    %724 = vmatpush1.bf16.msra.mxu0 %v535
    %725 = vmatprep.subr.bf16.mxu0 0
    %726 = vmatpush1.bf16.msra.mxu0 %v536
    %727 = vmatprep.subr.bf16.mxu0 0
    %728 = vmatpush1.bf16.msra.mxu0 %v537
    %729 = vmatprep.subr.bf16.mxu0 0
    %730 = vmatpush1.bf16.msra.mxu0 %v538
    %731 = vmatprep.mubr.bf16.mxu0 %v224
    %732 = vmatmul.mubr.bf16.gmra.mrb[0].mxu0 %v223
    %v733 = vpop.f32.mrb[0].mxu0
    %v734 = vadd.f32 %v694, %v733
    %v735 = vpop.f32.mrb[0].mxu0
    %v736 = vpop.f32.mrb[0].mxu0
    %v737 = vpop.f32.mrb[0].mxu0
    %738 = vdwg.mxu0
    %739 = vmatprep.subr.bf16.mxu0 0
    %740 = vmatpush1.bf16.msra.mxu0 %v539
    %741 = vmatprep.subr.bf16.mxu0 0
    %742 = vmatpush1.bf16.msra.mxu0 %v540
    %743 = vmatprep.subr.bf16.mxu0 0
    %744 = vmatpush1.bf16.msra.mxu0 %v541
    %745 = vmatprep.subr.bf16.mxu0 0
    %746 = vmatpush1.bf16.msra.mxu0 %v542
    %747 = vmatprep.subr.bf16.mxu0 0
    %748 = vmatpush1.bf16.msra.mxu0 %v543
    %749 = vmatprep.subr.bf16.mxu0 0
    %750 = vmatpush1.bf16.msra.mxu0 %v544
    %751 = vmatprep.subr.bf16.mxu0 0
    %752 = vmatpush1.bf16.msra.mxu0 %v545
    %753 = vmatprep.subr.bf16.mxu0 0
    %754 = vmatpush1.bf16.msra.mxu0 %v546
    %755 = vmatprep.subr.bf16.mxu0 0
    %756 = vmatpush1.bf16.msra.mxu0 %v547
    %757 = vmatprep.subr.bf16.mxu0 0
    %758 = vmatpush1.bf16.msra.mxu0 %v548
    %759 = vmatprep.subr.bf16.mxu0 0
    %760 = vmatpush1.bf16.msra.mxu0 %v549
    %761 = vmatprep.subr.bf16.mxu0 0
    %762 = vmatpush1.bf16.msra.mxu0 %v550
    %763 = vmatprep.subr.bf16.mxu0 0
    %764 = vmatpush1.bf16.msra.mxu0 %v551
    %765 = vmatprep.subr.bf16.mxu0 0
    %766 = vmatpush1.bf16.msra.mxu0 %v552
    %767 = vmatprep.subr.bf16.mxu0 0
    %768 = vmatpush1.bf16.msra.mxu0 %v553
    %769 = vmatprep.subr.bf16.mxu0 0
    %770 = vmatpush1.bf16.msra.mxu0 %v554
    %771 = vmatprep.mubr.bf16.mxu0 %v226
    %772 = vmatmul.mubr.bf16.gmra.mrb[0].mxu0 %v225
    %v773 = vpop.f32.mrb[0].mxu0
    %v774 = vadd.f32 %v734, %v773
    %v775 = vpop.f32.mrb[0].mxu0
    %v776 = vpop.f32.mrb[0].mxu0
    %v777 = vpop.f32.mrb[0].mxu0
    %778 = vdwg.mxu0
    %v779 = vadd.f32 %v206, %v774
    %780 = vst [vmem:[#allocation2] sm:$0xff] %v779
    // Predicated region
    $region42: #{tpu_custom_call.1} parent=1 // pred_check
      %p781 = pneg %p64
    $region43: #{tpu_custom_call.1} parent=1 // pred_check_branch
      %783 = sbr.rel (%p781) target = $region45
    $region44: #{tpu_custom_call.1} parent=1 // pred_region
      %v784 = vld [vmem:[#allocation2] sm:$0xff]
      %v785 = vld [vmem:[%s2] sm:$0x1]
      %v787 = vlaneseq
      %v788 = vshrl.u32 %v787, 7
      %v789 = vsub.s32 0, %v788
      %v790 = vrot.slane %v785, %v789
      %v792 = vadd.f32 %v784, %v790
      %v793 = vmax.f32 %v792, 0.0
      %v794 = vpack.c.bf16 %v793, %v793
      %v795 = vld [vmem:[#allocation8] sm:$0xf]
      %v796 = vld [vmem:[#allocation8 + $0x4] sm:$0xf]
      %v797 = vld [vmem:[#allocation8 + $0x8] sm:$0xf]
      %v798 = vld [vmem:[#allocation8 + $0xc] sm:$0xf]
      %v799 = vld [vmem:[#allocation8 + $0x10] sm:$0xf]
      %v800 = vld [vmem:[#allocation8 + $0x14] sm:$0xf]
      %v801 = vld [vmem:[#allocation8 + $0x18] sm:$0xf]
      %v802 = vld [vmem:[#allocation8 + $0x1c] sm:$0xf]
      %v803 = vld [vmem:[#allocation8 + $0x20] sm:$0xf]
      %v804 = vld [vmem:[#allocation8 + $0x24] sm:$0xf]
      %v805 = vld [vmem:[#allocation8 + $0x28] sm:$0xf]
      %v806 = vld [vmem:[#allocation8 + $0x2c] sm:$0xf]
      %v807 = vld [vmem:[#allocation8 + $0x30] sm:$0xf]
      %v808 = vld [vmem:[#allocation8 + $0x34] sm:$0xf]
      %v809 = vld [vmem:[#allocation8 + $0x38] sm:$0xf]
      %v810 = vld [vmem:[#allocation8 + $0x3c] sm:$0xf]
      %v811 = vld [vmem:[%s4] sm:$0x1]
      %v813 = vlaneseq
      %v814 = vshrl.u32 %v813, 7
      %v815 = vsub.s32 0, %v814
      %v816 = vrot.slane %v811, %v815
      %v834 = vunpack.c.l.b16 %v795
      %v835 = vunpack.c.l.b16 %v796
      %v836 = vunpack.c.l.b16 %v797
      %v837 = vunpack.c.l.b16 %v798
      %v838 = vunpack.c.l.b16 %v799
      %v839 = vunpack.c.l.b16 %v800
      %v840 = vunpack.c.l.b16 %v801
      %v841 = vunpack.c.l.b16 %v802
      %v842 = vunpack.c.l.b16 %v803
      %v843 = vunpack.c.l.b16 %v804
      %v844 = vunpack.c.l.b16 %v805
      %v845 = vunpack.c.l.b16 %v806
      %v846 = vunpack.c.l.b16 %v807
      %v847 = vunpack.c.l.b16 %v808
      %v848 = vunpack.c.l.b16 %v809
      %v849 = vunpack.c.l.b16 %v810
      %v850 = vpack.c.b16 %v835, %v834
      %v851 = vpack.c.b16 %v837, %v836
      %v852 = vpack.c.b16 %v839, %v838
      %v853 = vpack.c.b16 %v841, %v840
      %v854 = vpack.c.b16 %v843, %v842
      %v855 = vpack.c.b16 %v845, %v844
      %v856 = vpack.c.b16 %v847, %v846
      %v857 = vpack.c.b16 %v849, %v848
      %866 = vmatprep.subr.bf16.mxu0 0
      %867 = vmatpush1.bf16.msra.mxu0 %v850
      %868 = vmatprep.subr.bf16.mxu0 0
      %869 = vmatpush1.bf16.msra.mxu0 %v851
      %870 = vmatprep.subr.bf16.mxu0 0
      %871 = vmatpush1.bf16.msra.mxu0 %v852
      %872 = vmatprep.subr.bf16.mxu0 0
      %873 = vmatpush1.bf16.msra.mxu0 %v853
      %874 = vmatprep.subr.bf16.mxu0 0
      %875 = vmatpush1.bf16.msra.mxu0 %v854
      %876 = vmatprep.subr.bf16.mxu0 0
      %877 = vmatpush1.bf16.msra.mxu0 %v855
      %878 = vmatprep.subr.bf16.mxu0 0
      %879 = vmatpush1.bf16.msra.mxu0 %v856
      %880 = vmatprep.subr.bf16.mxu0 0
      %881 = vmatpush1.bf16.msra.mxu0 %v857
      %882 = vmatprep.subr.bf16.mxu0 0
      %883 = vmatpush1.bf16.msra.mxu0 0
      %884 = vmatprep.subr.bf16.mxu0 0
      %885 = vmatpush1.bf16.msra.mxu0 0
      %886 = vmatprep.subr.bf16.mxu0 0
      %887 = vmatpush1.bf16.msra.mxu0 0
      %888 = vmatprep.subr.bf16.mxu0 0
      %889 = vmatpush1.bf16.msra.mxu0 0
      %890 = vmatprep.subr.bf16.mxu0 0
      %891 = vmatpush1.bf16.msra.mxu0 0
      %892 = vmatprep.subr.bf16.mxu0 0
      %893 = vmatpush1.bf16.msra.mxu0 0
      %894 = vmatprep.subr.bf16.mxu0 0
      %895 = vmatpush1.bf16.msra.mxu0 0
      %896 = vmatprep.subr.bf16.mxu0 0
      %897 = vmatpush1.bf16.msra.mxu0 0
      %898 = vmatprep.mubr.bf16.mxu0 0
      %899 = vmatmul.mubr.bf16.gmra.mrb[0].mxu0 %v794
      %v900 = vpop.f32.mrb[0].mxu0
      %v901 = vadd.f32 %v816, %v900
      %v902 = vpop.f32.mrb[0].mxu0
      %v903 = vpop.f32.mrb[0].mxu0
      %v904 = vpop.f32.mrb[0].mxu0
      %905 = vdwg.mxu0
      %v906 = vlaneseq
      %v907 = vand.u32 %v906, 127
      %vm908 = vcmp.lt.s32.totalorder %v907, 8
      %v909 = vsel %vm908, %v901, -1e+30
      %910 = vmax.xlane.f32.xlu0 %v909
      %v911 = vpop.xlane.xlu0 %910
      %v912 = vsub.f32 %v909, %v911
      %v913 = vmul.f32 %v912, 1.442695
      %v914 = vpow.pop %v913
      %915 = vadd.xlane.f32.xlu0 %v914
      %v916 = vpop.xlane.xlu0 %915
      %v917 = vlog2.pop %v916
      %v918 = vmul.f32 %v917, 0.6931472
      %v919 = vsub.f32 %v912, %v918
      %v920 = vld [vmem:[%s5] sm:$0xff]
      %921 = vset.pattern.permute.xlu0 0
      %922 = vperm.xlu0 %921, %v920
      %v923 = vpop.permute.xlu0 %922
      %vm924 = vcmp.eq.s32.totalorder %v907, %v923
      %v925 = vsel %vm924, %v919, 0.0
      %926 = vadd.xlane.f32.xlu0 %v925
      %v927 = vpop.xlane.xlu0 %926
      %v928 = vsub.f32 0.0, %v927
      %929 = vst [vmem:[#allocation9] sm:$0xff] %v928
    $region45: #{tpu_custom_call.1} parent=1 // pred_fallthru
      _
    // Predicated region
    $region46: #{tpu_custom_call.1} parent=1 // pred_check
      _
    $region47: #{tpu_custom_call.1} parent=1 // pred_check_branch
      %931 = sbr.rel (0) target = $region49
    $region48: #{tpu_custom_call.1} parent=1 // pred_region
      %s933 = ssub.s32 128, 128
      %934 = vsyncadd [#allocation5], %s933
      %s936 = sshll.u32 [#allocation9], 4
      %s937 = int_to_ptr.vmem [resolvable:$true] %s936
      %939 = dma.vmem_to_hbm [thread:$0]  %s937, 128, %s6, [#allocation5]
    $region49: #{tpu_custom_call.1} parent=1 // pred_fallthru
      _
    // Predicated region
    $region50: #{tpu_custom_call.1} parent=1 // pred_check
      _
    $region51: #{tpu_custom_call.1} parent=1 // pred_check_branch
      %941 = sbr.rel (0) target = $region53
    $region52: #{tpu_custom_call.1} parent=1 // pred_region
      %942 = dma.done [#allocation5], 128
    $region53: #{tpu_custom_call.1} parent=1 // pred_fallthru
      _
    %943 = vsyncpa [#allocation4], 1
    %944 = vsyncpa [#allocation7], 1
    %945 = vsyncpa [#allocation5], 1

</llo_original>
